<compile_context>
chip_gen: v6e
topology: v6e:2x2x1
jax: 0.10.0
libtpu: 0.0.40
codegen_flags: <defaults>
</compile_context>

<pallas_src>
import functools

import jax
import jax.numpy as jnp
from jax.experimental import pallas as pl
from jax.experimental.pallas import tpu as pltpu


def _activation(z):
    # Stable, 2-transcendental form of log(exp(z) + exp(-z)):
    #   log(e^z + e^-z) = |z| + log(1 + e^(-2|z|))
    a = jnp.abs(z)
    return a + jnp.log(1.0 + jnp.exp(-2.0 * a))


def _activation_naive(z):
    # Literal PyTorch formula (reference / comparison only).
    return jnp.log(jnp.exp(z) + jnp.exp(-z))


def _phinet_kernel(num_hidden, n_chunks, chunk,
                   s_ref, w0_ref, b0_ref, wh_ref, bh_ref, wf_ref, out_ref):
    """Batch-on-lanes PhiNet forward for one batch tile (tb = n_chunks*chunk).

    Shapes:
      s_ref : (input_dim, tb)   w0_ref: (H, input_dim)   b0_ref: (H, 1)
      wh_ref: (L, H, H)         bh_ref: (L, H, 1)        wf_ref: (1, H)
      out_ref: (1, tb)

    NOTE: lanes (batch columns) are fully independent; out-of-range lanes of a
    ragged edge block hold unspecified data and are masked on store.  Never
    add a cross-lane (cross-column) reduction here.
    """

    def chunk_body(c, carry):
        off = pl.multiple_of(c * chunk, chunk)
        s = s_ref[:, pl.ds(off, chunk)]                        # (input_dim, chunk)

        # Layer 0: single MXU contraction (tau is row 0 of s / column 0 of W0).
        z0 = (jnp.dot(w0_ref[...], s, preferred_element_type=jnp.float32)
              + b0_ref[...])
        u = _activation(z0)

        # Residual hidden layers (depth is small & static).
        # TODO(synk): for num_hidden > 4, switch to an unrolled fori_loop over
        # wh_ref[i] / bh_ref[i] to bound vreg live ranges at larger depth.
        for i in range(num_hidden):
            u = u + _activation(
                jnp.dot(wh_ref[i], u, preferred_element_type=jnp.float32)
                + bh_ref[i])

        # Final projection on the MXU -> lane-dense (1, chunk) store.
        out_ref[:, pl.ds(off, chunk)] = jnp.dot(
            wf_ref[...], u, preferred_element_type=jnp.float32)
        return carry

    # Sub-chunk loop (unrolled): bounds the per-chunk live set, keeps LLO
    # scheduler visibility, amortizes per-grid-step overhead over a big tile.
    jax.lax.fori_loop(0, n_chunks, chunk_body, 0, unroll=True)


def _round_up(a, m):
    return ((a + m - 1) // m) * m


def phinet_forward(tau, x, params, *, tile_b=1024, max_chunk=512):
    """Pallas-backed PhiNet.forward(tau, x).

    params = (w0, b0, wh, bh, wf) with
      w0: (input_dim, H)   b0: (1, H)
      wh: (L, H, H)        bh: (L, 1, H)
      wf: (H, 1)
    """
    w0, b0, wh, bh, wf = params
    B, x_dim = x.shape
    H = w0.shape[1]
    num_hidden = wh.shape[0]

    # ---- tiny wrapper-side layout plumbing (no pads, one small concat) ----
    # Fold tau into x: a single streamed (input_dim, B) operand.
    sT = jnp.concatenate(
        [tau.reshape(1, -1).astype(jnp.float32),
         x.astype(jnp.float32).T], axis=0)                     # (input_dim, B)
    input_dim = sT.shape[0]
    assert w0.shape[0] == input_dim, "w0 rows must equal 1 + x feature dim"

    w0T = w0.astype(jnp.float32).T                             # (H, input_dim)
    b0T = b0.astype(jnp.float32).T                             # (H, 1)
    wfr = wf.astype(jnp.float32).reshape(1, H)                 # (1, H)
    if num_hidden > 0:
        whT = jnp.transpose(wh.astype(jnp.float32), (0, 2, 1))  # (L, H, H)
        bhT = jnp.transpose(bh.astype(jnp.float32), (0, 2, 1))  # (L, H, 1)
    else:  # keep BlockSpec dims >= 1; the hidden-layer loop is skipped
        whT = jnp.zeros((1, H, H), jnp.float32)
        bhT = jnp.zeros((1, H, 1), jnp.float32)
    L_eff = whT.shape[0]

    # ---- batch tiling: big lane-aligned tiles, ragged edge handled by Pallas ----
    tb = min(_round_up(tile_b, 128), _round_up(B, 128))
    if tb > 128 and pl.cdiv(B, tb) < 2:
        # keep >= 2 grid blocks when the batch allows it (megacore / v7x 2 TCs)
        tb = _round_up(pl.cdiv(_round_up(B, 128), 2), 128)
    n_blocks = pl.cdiv(B, tb)

    # In-kernel sub-chunking keeps the (H, chunk) live set inside the vreg file.
    chunk = min(tb, max(128, _round_up(max_chunk, 128)))
    while tb % chunk:
        chunk -= 128
    n_chunks = tb // chunk

    kernel = functools.partial(_phinet_kernel, num_hidden, n_chunks, chunk)

    phi_row = pl.pallas_call(
        kernel,
        out_shape=jax.ShapeDtypeStruct((1, B), jnp.float32),
        grid_spec=pltpu.PrefetchScalarGridSpec(
            num_scalar_prefetch=0,
            grid=(n_blocks,),
            in_specs=[
                pl.BlockSpec((input_dim, tb), lambda i: (0, i)),      # s^T
                pl.BlockSpec((H, input_dim), lambda i: (0, 0)),       # W0^T
                pl.BlockSpec((H, 1), lambda i: (0, 0)),               # b0^T
                pl.BlockSpec((L_eff, H, H), lambda i: (0, 0, 0)),     # Wh^T
                pl.BlockSpec((L_eff, H, 1), lambda i: (0, 0, 0)),     # bh^T
                pl.BlockSpec((1, H), lambda i: (0, 0)),               # w_final row
            ],
            out_specs=pl.BlockSpec((1, tb), lambda i: (0, i)),
        ),
        compiler_params=pltpu.CompilerParams(
            dimension_semantics=("parallel",)),
    )(sT, w0T, b0T, whT, bhT, wfr)
    return phi_row[0]


def init_phinet_params(key, input_dim, hidden_dim, num_layers):
    """Deterministic parameter init (PyTorch-Linear-style uniform ranges)."""
    ks = jax.random.split(key, 2 * num_layers + 1)
    bound0 = 1.0 / jnp.sqrt(input_dim)
    w0 = jax.random.uniform(ks[0], (input_dim, hidden_dim), jnp.float32,
                            -bound0, bound0)
    b0 = jax.random.uniform(ks[1], (1, hidden_dim), jnp.float32,
                            -bound0, bound0)
    boundh = 1.0 / jnp.sqrt(hidden_dim)
    num_hidden = num_layers - 1
    wh_list, bh_list = [], []
    for l in range(num_hidden):
        wh_list.append(jax.random.uniform(ks[2 + 2 * l],
                                          (hidden_dim, hidden_dim),
                                          jnp.float32, -boundh, boundh))
        bh_list.append(jax.random.uniform(ks[3 + 2 * l], (1, hidden_dim),
                                          jnp.float32, -boundh, boundh))
    wh = jnp.stack(wh_list, axis=0) if num_hidden > 0 else jnp.zeros(
        (0, hidden_dim, hidden_dim), jnp.float32)
    bh = jnp.stack(bh_list, axis=0) if num_hidden > 0 else jnp.zeros(
        (0, 1, hidden_dim), jnp.float32)
    # w_final ~ torch.randn(hidden_dim); stored as (H, 1) column vector.
    wf = jax.random.normal(ks[-1], (hidden_dim, 1), jnp.float32)
    return w0, b0, wh, bh, wf


def phinet_reference(tau, x, params):
    """Plain-JAX reference mirroring the PyTorch forward literally.

    Matmuls use Precision.HIGHEST so the reference is true-f32 (XLA's default
    TPU f32 matmul may use reduced precision, which would fail a tight check
    against the full-precision in-kernel dots).
    """
    if tau.ndim == 1:
        tau = tau[:, None]
    s = jnp.concatenate([tau, x], axis=-1).astype(jnp.float32)
    w0, b0, wh, bh, wf = params
    hp = jax.lax.Precision.HIGHEST
    u = _activation_naive(jnp.dot(s, w0, precision=hp) + b0)
    for i in range(wh.shape[0]):
        u = u + _activation_naive(jnp.dot(u, wh[i], precision=hp) + bh[i])
    return jnp.dot(u, wf, precision=hp)[:, 0]


if __name__ == "__main__":
    # Shapes consistent with PhiNet(input_dim=8, hidden_dim=32, num_layers=3).
    batch = 16
    x_dim = 7
    input_dim = x_dim + 1     # tau gets concatenated in front of x
    hidden_dim = 32
    num_layers = 3

    key = jax.random.PRNGKey(0)
    k_tau, k_x, k_params, k_tau2, k_x2 = jax.random.split(key, 5)
    tau = jax.random.uniform(k_tau, (batch,), jnp.float32)     # 1-D tau path
    x = jax.random.normal(k_x, (batch, x_dim), jnp.float32)

    params = init_phinet_params(k_params, input_dim, hidden_dim, num_layers)

    phi = jax.block_until_ready(phinet_forward(tau, x, params))
    phi_ref = phinet_reference(tau, x, params)
    assert phi.shape == (batch,)
    assert jnp.allclose(phi, phi_ref, rtol=1e-4, atol=1e-4), (
        "Pallas output mismatch vs reference (small batch)")

    # Second check: multi-block grid + ragged edge block (B not a tile multiple).
    batch2 = 300
    tau2 = jax.random.uniform(k_tau2, (batch2,), jnp.float32)
    x2 = jax.random.normal(k_x2, (batch2, x_dim), jnp.float32)
    phi2 = jax.block_until_ready(phinet_forward(tau2, x2, params))
    phi2_ref = phinet_reference(tau2, x2, params)
    assert phi2.shape == (batch2,)
    assert jnp.allclose(phi2, phi2_ref, rtol=1e-4, atol=1e-4), (
        "Pallas output mismatch vs reference (ragged multi-block batch)")

    print("KERNEL_OK")
</pallas_src>

<mosaic_0001>
module attributes {stable_mosaic.version = 11 : i64} {
  func.func @_phinet_kernel(%arg0: i32, %arg1: memref<8x128xf32, #tpu.memory_space<vmem>>, %arg2: memref<32x8xf32, #tpu.memory_space<vmem>>, %arg3: memref<32x1xf32, #tpu.memory_space<vmem>>, %arg4: memref<2x32x32xf32, #tpu.memory_space<vmem>>, %arg5: memref<2x32x1xf32, #tpu.memory_space<vmem>>, %arg6: memref<1x32xf32, #tpu.memory_space<vmem>>, %arg7: memref<1x128xf32, #tpu.memory_space<vmem>>) attributes {dimension_semantics = [#tpu.dimension_semantics<parallel>], iteration_bounds = array<i64: 1>, scalar_prefetch = 0 : i64, scratch_operands = 0 : i64, tpu.core_type = #tpu.core_type<tc>, window_params = [{transform_indices = @transform_0, window_bounds = array<i64: 8, 128>}, {pipeline_mode = #tpu.pipeline_mode<synchronous>, transform_indices = @transform_1, window_bounds = array<i64: 32, 8>}, {pipeline_mode = #tpu.pipeline_mode<synchronous>, transform_indices = @transform_2, window_bounds = array<i64: 32, 1>}, {pipeline_mode = #tpu.pipeline_mode<synchronous>, transform_indices = @transform_3, window_bounds = array<i64: 2, 32, 32>}, {pipeline_mode = #tpu.pipeline_mode<synchronous>, transform_indices = @transform_4, window_bounds = array<i64: 2, 32, 1>}, {pipeline_mode = #tpu.pipeline_mode<synchronous>, transform_indices = @transform_5, window_bounds = array<i64: 1, 32>}, {transform_indices = @transform_6, window_bounds = array<i64: 1, 128>}]} {
    %c0_i32 = arith.constant 0 : i32
    %c128_i32 = arith.constant 128 : i32
    %0 = arith.muli %c0_i32, %c128_i32 : i32
    %1 = tpu.assume_multiple %0, 128 : i32
    %c0 = arith.constant 0 : index
    %2 = arith.index_cast %1 : i32 to index
    %3 = vector.load %arg1[%c0, %2] : memref<8x128xf32, #tpu.memory_space<vmem>>, vector<8x128xf32>
    %c0_0 = arith.constant 0 : index
    %c0_1 = arith.constant 0 : index
    %4 = vector.load %arg2[%c0_0, %c0_1] : memref<32x8xf32, #tpu.memory_space<vmem>>, vector<32x8xf32>
    %cst = arith.constant dense<0.000000e+00> : vector<32x128xf32>
    %5 = tpu.matmul %4, %3, %cst {dimension_numbers = #tpu.dot_dimension_numbers<[1], [0], [0], [1], [0, 0, 1, 1], [], []>} : vector<32x8xf32>, vector<8x128xf32>, vector<32x128xf32> -> vector<32x128xf32>
    %c0_2 = arith.constant 0 : index
    %c0_3 = arith.constant 0 : index
    %6 = vector.load %arg3[%c0_2, %c0_3] : memref<32x1xf32, #tpu.memory_space<vmem>>, vector<32x1xf32>
    %7 = vector.broadcast %6 : vector<32x1xf32> to vector<32x128xf32>
    %8 = arith.addf %5, %7 : vector<32x128xf32>
    %9 = math.absf %8 : vector<32x128xf32>
    %cst_4 = arith.constant -2.000000e+00 : f32
    %10 = vector.broadcast %cst_4 : f32 to vector<32x128xf32>
    %11 = arith.mulf %10, %9 : vector<32x128xf32>
    %12 = math.exp %11 : vector<32x128xf32>
    %cst_5 = arith.constant 1.000000e+00 : f32
    %13 = vector.broadcast %cst_5 : f32 to vector<32x128xf32>
    %14 = arith.addf %13, %12 : vector<32x128xf32>
    %15 = math.log %14 : vector<32x128xf32>
    %16 = arith.addf %9, %15 : vector<32x128xf32>
    %c0_6 = arith.constant 0 : index
    %c0_7 = arith.constant 0 : index
    %c0_8 = arith.constant 0 : index
    %17 = vector.load %arg4[%c0_6, %c0_7, %c0_8] : memref<2x32x32xf32, #tpu.memory_space<vmem>>, vector<1x32x32xf32>
    %18 = vector.shape_cast %17 : vector<1x32x32xf32> to vector<32x32xf32>
    %cst_9 = arith.constant dense<0.000000e+00> : vector<32x128xf32>
    %19 = tpu.matmul %18, %16, %cst_9 {dimension_numbers = #tpu.dot_dimension_numbers<[1], [0], [0], [1], [0, 0, 1, 1], [], []>} : vector<32x32xf32>, vector<32x128xf32>, vector<32x128xf32> -> vector<32x128xf32>
    %c0_10 = arith.constant 0 : index
    %c0_11 = arith.constant 0 : index
    %c0_12 = arith.constant 0 : index
    %20 = vector.load %arg5[%c0_10, %c0_11, %c0_12] : memref<2x32x1xf32, #tpu.memory_space<vmem>>, vector<1x32x1xf32>
    %21 = vector.shape_cast %20 : vector<1x32x1xf32> to vector<32x1xf32>
    %22 = vector.broadcast %21 : vector<32x1xf32> to vector<32x128xf32>
    %23 = arith.addf %19, %22 : vector<32x128xf32>
    %24 = math.absf %23 : vector<32x128xf32>
    %cst_13 = arith.constant -2.000000e+00 : f32
    %25 = vector.broadcast %cst_13 : f32 to vector<32x128xf32>
    %26 = arith.mulf %25, %24 : vector<32x128xf32>
    %27 = math.exp %26 : vector<32x128xf32>
    %cst_14 = arith.constant 1.000000e+00 : f32
    %28 = vector.broadcast %cst_14 : f32 to vector<32x128xf32>
    %29 = arith.addf %28, %27 : vector<32x128xf32>
    %30 = math.log %29 : vector<32x128xf32>
    %31 = arith.addf %24, %30 : vector<32x128xf32>
    %32 = arith.addf %16, %31 : vector<32x128xf32>
    %c1 = arith.constant 1 : index
    %c0_15 = arith.constant 0 : index
    %c0_16 = arith.constant 0 : index
    %33 = vector.load %arg4[%c1, %c0_15, %c0_16] : memref<2x32x32xf32, #tpu.memory_space<vmem>>, vector<1x32x32xf32>
    %34 = vector.shape_cast %33 : vector<1x32x32xf32> to vector<32x32xf32>
    %cst_17 = arith.constant dense<0.000000e+00> : vector<32x128xf32>
    %35 = tpu.matmul %34, %32, %cst_17 {dimension_numbers = #tpu.dot_dimension_numbers<[1], [0], [0], [1], [0, 0, 1, 1], [], []>} : vector<32x32xf32>, vector<32x128xf32>, vector<32x128xf32> -> vector<32x128xf32>
    %c1_18 = arith.constant 1 : index
    %c0_19 = arith.constant 0 : index
    %c0_20 = arith.constant 0 : index
    %36 = vector.load %arg5[%c1_18, %c0_19, %c0_20] : memref<2x32x1xf32, #tpu.memory_space<vmem>>, vector<1x32x1xf32>
    %37 = vector.shape_cast %36 : vector<1x32x1xf32> to vector<32x1xf32>
    %38 = vector.broadcast %37 : vector<32x1xf32> to vector<32x128xf32>
    %39 = arith.addf %35, %38 : vector<32x128xf32>
    %40 = math.absf %39 : vector<32x128xf32>
    %cst_21 = arith.constant -2.000000e+00 : f32
    %41 = vector.broadcast %cst_21 : f32 to vector<32x128xf32>
    %42 = arith.mulf %41, %40 : vector<32x128xf32>
    %43 = math.exp %42 : vector<32x128xf32>
    %cst_22 = arith.constant 1.000000e+00 : f32
    %44 = vector.broadcast %cst_22 : f32 to vector<32x128xf32>
    %45 = arith.addf %44, %43 : vector<32x128xf32>
    %46 = math.log %45 : vector<32x128xf32>
    %47 = arith.addf %40, %46 : vector<32x128xf32>
    %48 = arith.addf %32, %47 : vector<32x128xf32>
    %c0_23 = arith.constant 0 : index
    %c0_24 = arith.constant 0 : index
    %49 = vector.load %arg6[%c0_23, %c0_24] : memref<1x32xf32, #tpu.memory_space<vmem>>, vector<1x32xf32>
    %cst_25 = arith.constant dense<0.000000e+00> : vector<1x128xf32>
    %50 = tpu.matmul %49, %48, %cst_25 {dimension_numbers = #tpu.dot_dimension_numbers<[1], [0], [0], [1], [0, 0, 1, 1], [], []>} : vector<1x32xf32>, vector<32x128xf32>, vector<1x128xf32> -> vector<1x128xf32>
    %c0_26 = arith.constant 0 : index
    %51 = arith.index_cast %1 : i32 to index
    %52 = vector.load %arg7[%c0_26, %51] : memref<1x128xf32, #tpu.memory_space<vmem>>, vector<1x128xf32>
    tpu.vector_store %arg7[%c0_26, %51], %50 {strides = array<i32>} : memref<1x128xf32, #tpu.memory_space<vmem>>, vector<1x128xf32>,
    %c1_i32 = arith.constant 1 : i32
    return
  }
  func.func @transform_0(%arg0: i32) -> (i32, i32) {
    %c0_i32 = arith.constant 0 : i32
    %c0_i32_0 = arith.constant 0 : i32
    return %c0_i32, %arg0 : i32, i32
  }
  func.func @transform_1(%arg0: i32) -> (i32, i32) {
    %c0_i32 = arith.constant 0 : i32
    %c0_i32_0 = arith.constant 0 : i32
    %c0_i32_1 = arith.constant 0 : i32
    return %c0_i32, %c0_i32_0 : i32, i32
  }
  func.func @transform_2(%arg0: i32) -> (i32, i32) {
    %c0_i32 = arith.constant 0 : i32
    %c0_i32_0 = arith.constant 0 : i32
    %c0_i32_1 = arith.constant 0 : i32
    return %c0_i32, %c0_i32_0 : i32, i32
  }
  func.func @transform_3(%arg0: i32) -> (i32, i32, i32) {
    %c0_i32 = arith.constant 0 : i32
    %c0_i32_0 = arith.constant 0 : i32
    %c0_i32_1 = arith.constant 0 : i32
    %c0_i32_2 = arith.constant 0 : i32
    return %c0_i32, %c0_i32_0, %c0_i32_1 : i32, i32, i32
  }
  func.func @transform_4(%arg0: i32) -> (i32, i32, i32) {
    %c0_i32 = arith.constant 0 : i32
    %c0_i32_0 = arith.constant 0 : i32
    %c0_i32_1 = arith.constant 0 : i32
    %c0_i32_2 = arith.constant 0 : i32
    return %c0_i32, %c0_i32_0, %c0_i32_1 : i32, i32, i32
  }
  func.func @transform_5(%arg0: i32) -> (i32, i32) {
    %c0_i32 = arith.constant 0 : i32
    %c0_i32_0 = arith.constant 0 : i32
    %c0_i32_1 = arith.constant 0 : i32
    return %c0_i32, %c0_i32_0 : i32, i32
  }
  func.func @transform_6(%arg0: i32) -> (i32, i32) {
    %c0_i32 = arith.constant 0 : i32
    %c0_i32_0 = arith.constant 0 : i32
    return %c0_i32, %arg0 : i32, i32
  }
}

</mosaic_0001>

<llo_original>
// kernel: tpu_custom_call.1
$region0: #{tpu_custom_call.1}
  #allocation0 [shape = 'u32[]', space=smem, size = 0x4, offset = 0x4, fixed_abs, tag = 'smem constant byte address 0x4 - core index']
  #allocation1 [shape = 'u32[144,128]{1,0:T(1,128)}', space=vmem, size = 0x12000, scoped, tag = 'internal scratch']
  %s0 = inlined_call_operand.vmem [shape: f32[8,16], index: 0, kind: input, shape index: {}]
  %s1 = inlined_call_operand.vmem [shape: f32[32,8], index: 1, kind: input, shape index: {}]
  %s2 = inlined_call_operand.vmem [shape: f32[32,1], index: 2, kind: input, shape index: {}]
  %s3 = inlined_call_operand.vmem [shape: f32[2,32,32], index: 3, kind: input, shape index: {}]
  %s4 = inlined_call_operand.vmem [shape: f32[2,32,1], index: 4, kind: input, shape index: {}]
  %s5 = inlined_call_operand.vmem [shape: f32[1,32], index: 5, kind: input, shape index: {}]
  %s6 = inlined_call_operand.hbm [shape: f32[1,16], index: 6, kind: output, shape index: {}]
  %s7 = sld [smem:[#allocation0]]
  $region34: #{tpu_custom_call.1} parent=0
    _
  %s9 = ssub.s32 1, %s7
  %s10 = scalar_select 0, %s9, %s7
  $region1: #{tpu_custom_call.1} parent=0
    #allocation2 [shape = 'u8[512]{0}', space=vmem, size = 0x400, scoped, tag = 'output window, operand 0, single buffered']
    #allocation3 [shape = 's32[1]{0}', space=sflag, size = 0x4, scoped, tag = 'scoped memory for tpu_custom_call.1']
    %11 = vsyncpa [#allocation3], 0
    // Predicated region
    $region2: #{tpu_custom_call.1} parent=1 // pred_check
      _
    $region3: #{tpu_custom_call.1} parent=1 // pred_check_branch
      %13 = sbr.rel (0) target = $region5
    $region4: #{tpu_custom_call.1} parent=1 // pred_region
      _
    $region5: #{tpu_custom_call.1} parent=1 // pred_fallthru
      _
    // Predicated region
    $region6: #{tpu_custom_call.1} parent=1 // pred_check
      _
    $region7: #{tpu_custom_call.1} parent=1 // pred_check_branch
      %15 = sbr.rel (0) target = $region9
    $region8: #{tpu_custom_call.1} parent=1 // pred_region
      _
    $region9: #{tpu_custom_call.1} parent=1 // pred_fallthru
      _
    // Predicated region
    $region10: #{tpu_custom_call.1} parent=1 // pred_check
      _
    $region11: #{tpu_custom_call.1} parent=1 // pred_check_branch
      %17 = sbr.rel (0) target = $region13
    $region12: #{tpu_custom_call.1} parent=1 // pred_region
      _
    $region13: #{tpu_custom_call.1} parent=1 // pred_fallthru
      _
    // Predicated region
    $region14: #{tpu_custom_call.1} parent=1 // pred_check
      _
    $region15: #{tpu_custom_call.1} parent=1 // pred_check_branch
      %19 = sbr.rel (0) target = $region17
    $region16: #{tpu_custom_call.1} parent=1 // pred_region
      _
    $region17: #{tpu_custom_call.1} parent=1 // pred_fallthru
      _
    // Predicated region
    $region18: #{tpu_custom_call.1} parent=1 // pred_check
      _
    $region19: #{tpu_custom_call.1} parent=1 // pred_check_branch
      %21 = sbr.rel (0) target = $region21
    $region20: #{tpu_custom_call.1} parent=1 // pred_region
      _
    $region21: #{tpu_custom_call.1} parent=1 // pred_fallthru
      _
    // Predicated region
    $region22: #{tpu_custom_call.1} parent=1 // pred_check
      _
    $region23: #{tpu_custom_call.1} parent=1 // pred_check_branch
      %23 = sbr.rel (0) target = $region25
    $region24: #{tpu_custom_call.1} parent=1 // pred_region
      _
    $region25: #{tpu_custom_call.1} parent=1 // pred_fallthru
      _
    %v24 = vld [vmem:[%s0] sm:$0xff]
    %v25 = vld [vmem:[%s1] sm:$0xff]
    %v26 = vld [vmem:[%s1 + $0x8] sm:$0xff]
    %v27 = vld [vmem:[%s1 + $0x10] sm:$0xff]
    %v28 = vld [vmem:[%s1 + $0x18] sm:$0xff]
    %v29 = vld [vmem:[%s2] sm:$0xff]
    %v30 = vld [vmem:[%s2 + $0x8] sm:$0xff]
    %v31 = vld [vmem:[%s2 + $0x10] sm:$0xff]
    %v32 = vld [vmem:[%s2 + $0x18] sm:$0xff]
    %34 = vset.pattern.permute.xlu0 0
    %35 = vperm.xlu0 %34, %v29
    %v36 = vpop.permute.xlu0 %35
    %39 = vset.pattern.permute.xlu0 0
    %40 = vperm.xlu0 %39, %v30
    %v41 = vpop.permute.xlu0 %40
    %44 = vset.pattern.permute.xlu0 0
    %45 = vperm.xlu0 %44, %v31
    %v46 = vpop.permute.xlu0 %45
    %49 = vset.pattern.permute.xlu0 0
    %50 = vperm.xlu0 %49, %v32
    %v51 = vpop.permute.xlu0 %50
    %vm53 = vcmask 64512
    %v55 = vsel %vm53, %v25, 0
    %v58 = vsel %vm53, %v26, 0
    %v61 = vsel %vm53, %v27, 0
    %v64 = vsel %vm53, %v28, 0
    %66 = vmatprep.subr.mxu0 0.0
    %67 = vmatpush1.msra.mxu0 0.0
    %68 = vmatprep.subr.mxu0 0.0
    %69 = vmatpush1.msra.mxu0 0.0
    %70 = vmatprep.subr.mxu0 0.0
    %71 = vmatpush1.msra.mxu0 0.0
    %72 = vmatprep.subr.mxu0 0.0
    %73 = vmatpush1.msra.mxu0 0.0
    %74 = vmatprep.subr.mxu0 0.0
    %75 = vmatpush1.msra.mxu0 0.0
    %76 = vmatprep.subr.mxu0 0.0
    %77 = vmatpush1.msra.mxu0 0.0
    %78 = vmatprep.subr.mxu0 0.0
    %79 = vmatpush1.msra.mxu0 0.0
    %80 = vmatprep.subr.mxu0 0.0
    %81 = vmatpush1.msra.mxu0 0.0
    %82 = vmatprep.subr.mxu0 0.0
    %83 = vmatpush1.msra.mxu0 0.0
    %84 = vmatprep.subr.mxu0 0.0
    %85 = vmatpush1.msra.mxu0 0.0
    %86 = vmatprep.subr.mxu0 0.0
    %87 = vmatpush1.msra.mxu0 0.0
    %88 = vmatprep.subr.mxu0 0.0
    %89 = vmatpush1.msra.mxu0 0.0
    %90 = vmatprep.subr.mxu0 0.0
    %91 = vmatpush1.msra.mxu0 0.0
    %92 = vmatprep.subr.mxu0 0.0
    %93 = vmatpush1.msra.mxu0 0.0
    %94 = vmatprep.subr.mxu0 0.0
    %95 = vmatpush1.msra.mxu0 0.0
    %96 = vmatprep.subr.mxu0 0.0
    %97 = vmatpush1.msra.mxu0 %v24
    %98 = vmatprep.subr.mxu0 0.0
    %99 = vmatpush2.msra.mxu0 0.0
    %100 = vmatprep.subr.mxu0 0.0
    %101 = vmatpush2.msra.mxu0 0.0
    %102 = vmatprep.subr.mxu0 0.0
    %103 = vmatpush2.msra.mxu0 0.0
    %104 = vmatprep.subr.mxu0 0.0
    %105 = vmatpush2.msra.mxu0 0.0
    %106 = vmatprep.subr.mxu0 0.0
    %107 = vmatpush2.msra.mxu0 0.0
    %108 = vmatprep.subr.mxu0 0.0
    %109 = vmatpush2.msra.mxu0 0.0
    %110 = vmatprep.subr.mxu0 0.0
    %111 = vmatpush2.msra.mxu0 0.0
    %112 = vmatprep.subr.mxu0 0.0
    %113 = vmatpush2.msra.mxu0 0.0
    %114 = vmatprep.subr.mxu0 0.0
    %115 = vmatpush2.msra.mxu0 0.0
    %116 = vmatprep.subr.mxu0 0.0
    %117 = vmatpush2.msra.mxu0 0.0
    %118 = vmatprep.subr.mxu0 0.0
    %119 = vmatpush2.msra.mxu0 0.0
    %120 = vmatprep.subr.mxu0 0.0
    %121 = vmatpush2.msra.mxu0 0.0
    %122 = vmatprep.subr.mxu0 0.0
    %123 = vmatpush2.msra.mxu0 0.0
    %124 = vmatprep.subr.mxu0 0.0
    %125 = vmatpush2.msra.mxu0 0.0
    %126 = vmatprep.subr.mxu0 0.0
    %127 = vmatpush2.msra.mxu0 0.0
    %128 = vmatprep.subr.mxu0 0.0
    %129 = vmatpush2.msra.mxu0 0.0
    %130 = vmatprep.mubr.f32.mxu0 0.0
    %131 = vmatmul.mubr.f32.gmra.mxu0 %v55
    %v132 = vpop.f32.mrf.mxu0
    %v133 = vadd.f32 %v36, %v132
    %v134 = vpop.f32.mrf.mxu0
    %135 = vmatprep.mubr.f32.mxu0 0.0
    %136 = vmatmul.mubr.f32.gmra.mxu0 %v58
    %v137 = vpop.f32.mrf.mxu0
    %v138 = vadd.f32 %v41, %v137
    %v139 = vpop.f32.mrf.mxu0
    %140 = vmatprep.mubr.f32.mxu0 0.0
    %141 = vmatmul.mubr.f32.gmra.mxu0 %v61
    %v142 = vpop.f32.mrf.mxu0
    %v143 = vadd.f32 %v46, %v142
    %v144 = vpop.f32.mrf.mxu0
    %145 = vmatprep.mubr.f32.mxu0 0.0
    %146 = vmatmul.mubr.f32.gmra.mxu0 %v64
    %v147 = vpop.f32.mrf.mxu0
    %v148 = vadd.f32 %v51, %v147
    %v149 = vpop.f32.mrf.mxu0
    %150 = vdwg.mxu0
    %v151 = vand.u32 2147483647, %v133
    %v152 = vand.u32 2147483647, %v138
    %v153 = vand.u32 2147483647, %v143
    %v154 = vand.u32 2147483647, %v148
    %v155 = vmul.f32 %v151, -2.0
    %v156 = vmul.f32 %v152, -2.0
    %v157 = vmul.f32 %v153, -2.0
    %v158 = vmul.f32 %v154, -2.0
    %v159 = vmul.f32 %v155, 1.442695
    %v160 = vpow.pop %v159
    %v161 = vmul.f32 %v156, 1.442695
    %v162 = vpow.pop %v161
    %v163 = vmul.f32 %v157, 1.442695
    %v164 = vpow.pop %v163
    %v165 = vmul.f32 %v158, 1.442695
    %v166 = vpow.pop %v165
    %v167 = vadd.f32 %v160, 1.0
    %v168 = vadd.f32 %v162, 1.0
    %v169 = vadd.f32 %v164, 1.0
    %v170 = vadd.f32 %v166, 1.0
    %v171 = vlog2.pop %v167
    %v172 = vmul.f32 %v171, 0.6931472
    %v173 = vlog2.pop %v168
    %v174 = vmul.f32 %v173, 0.6931472
    %v175 = vlog2.pop %v169
    %v176 = vmul.f32 %v175, 0.6931472
    %v177 = vlog2.pop %v170
    %v178 = vmul.f32 %v177, 0.6931472
    %v179 = vadd.f32 %v151, %v172
    %v180 = vadd.f32 %v152, %v174
    %v181 = vadd.f32 %v153, %v176
    %v182 = vadd.f32 %v154, %v178
    %v183 = vld [vmem:[%s3] sm:$0xff]
    %v184 = vld [vmem:[%s3 + $0x8] sm:$0xff]
    %v185 = vld [vmem:[%s3 + $0x10] sm:$0xff]
    %v186 = vld [vmem:[%s3 + $0x18] sm:$0xff]
    %v187 = vld [vmem:[%s4] sm:$0xff]
    %v188 = vld [vmem:[%s4 + $0x8] sm:$0xff]
    %v189 = vld [vmem:[%s4 + $0x10] sm:$0xff]
    %v190 = vld [vmem:[%s4 + $0x18] sm:$0xff]
    %192 = vset.pattern.permute.xlu0 0
    %193 = vperm.xlu0 %192, %v187
    %v194 = vpop.permute.xlu0 %193
    %197 = vset.pattern.permute.xlu0 0
    %198 = vperm.xlu0 %197, %v188
    %v199 = vpop.permute.xlu0 %198
    %202 = vset.pattern.permute.xlu0 0
    %203 = vperm.xlu0 %202, %v189
    %v204 = vpop.permute.xlu0 %203
    %207 = vset.pattern.permute.xlu0 0
    %208 = vperm.xlu0 %207, %v190
    %v209 = vpop.permute.xlu0 %208
    %vm211 = vcmask 261120
    %v213 = vsel %vm211, %v183, 0
    %v216 = vsel %vm211, %v184, 0
    %v219 = vsel %vm211, %v185, 0
    %v222 = vsel %vm211, %v186, 0
    %224 = vmatprep.subr.mxu0 0.0
    %225 = vmatpush1.msra.mxu0 0.0
    %226 = vmatprep.subr.mxu0 0.0
    %227 = vmatpush1.msra.mxu0 0.0
    %228 = vmatprep.subr.mxu0 0.0
    %229 = vmatpush1.msra.mxu0 0.0
    %230 = vmatprep.subr.mxu0 0.0
    %231 = vmatpush1.msra.mxu0 0.0
    %232 = vmatprep.subr.mxu0 0.0
    %233 = vmatpush1.msra.mxu0 0.0
    %234 = vmatprep.subr.mxu0 0.0
    %235 = vmatpush1.msra.mxu0 0.0
    %236 = vmatprep.subr.mxu0 0.0
    %237 = vmatpush1.msra.mxu0 0.0
    %238 = vmatprep.subr.mxu0 0.0
    %239 = vmatpush1.msra.mxu0 0.0
    %240 = vmatprep.subr.mxu0 0.0
    %241 = vmatpush1.msra.mxu0 0.0
    %242 = vmatprep.subr.mxu0 0.0
    %243 = vmatpush1.msra.mxu0 0.0
    %244 = vmatprep.subr.mxu0 0.0
    %245 = vmatpush1.msra.mxu0 0.0
    %246 = vmatprep.subr.mxu0 0.0
    %247 = vmatpush1.msra.mxu0 0.0
    %248 = vmatprep.subr.mxu0 0.0
    %249 = vmatpush1.msra.mxu0 %v182
    %250 = vmatprep.subr.mxu0 0.0
    %251 = vmatpush1.msra.mxu0 %v181
    %252 = vmatprep.subr.mxu0 0.0
    %253 = vmatpush1.msra.mxu0 %v180
    %254 = vmatprep.subr.mxu0 0.0
    %255 = vmatpush1.msra.mxu0 %v179
    %256 = vmatprep.subr.mxu0 0.0
    %257 = vmatpush2.msra.mxu0 0.0
    %258 = vmatprep.subr.mxu0 0.0
    %259 = vmatpush2.msra.mxu0 0.0
    %260 = vmatprep.subr.mxu0 0.0
    %261 = vmatpush2.msra.mxu0 0.0
    %262 = vmatprep.subr.mxu0 0.0
    %263 = vmatpush2.msra.mxu0 0.0
    %264 = vmatprep.subr.mxu0 0.0
    %265 = vmatpush2.msra.mxu0 0.0
    %266 = vmatprep.subr.mxu0 0.0
    %267 = vmatpush2.msra.mxu0 0.0
    %268 = vmatprep.subr.mxu0 0.0
    %269 = vmatpush2.msra.mxu0 0.0
    %270 = vmatprep.subr.mxu0 0.0
    %271 = vmatpush2.msra.mxu0 0.0
    %272 = vmatprep.subr.mxu0 0.0
    %273 = vmatpush2.msra.mxu0 0.0
    %274 = vmatprep.subr.mxu0 0.0
    %275 = vmatpush2.msra.mxu0 0.0
    %276 = vmatprep.subr.mxu0 0.0
    %277 = vmatpush2.msra.mxu0 0.0
    %278 = vmatprep.subr.mxu0 0.0
    %279 = vmatpush2.msra.mxu0 0.0
    %280 = vmatprep.subr.mxu0 0.0
    %281 = vmatpush2.msra.mxu0 0.0
    %282 = vmatprep.subr.mxu0 0.0
    %283 = vmatpush2.msra.mxu0 0.0
    %284 = vmatprep.subr.mxu0 0.0
    %285 = vmatpush2.msra.mxu0 0.0
    %286 = vmatprep.subr.mxu0 0.0
    %287 = vmatpush2.msra.mxu0 0.0
    %288 = vmatprep.mubr.f32.mxu0 0.0
    %289 = vmatmul.mubr.f32.gmra.mxu0 %v213
    %v290 = vpop.f32.mrf.mxu0
    %v291 = vadd.f32 %v194, %v290
    %v292 = vpop.f32.mrf.mxu0
    %293 = vmatprep.mubr.f32.mxu0 0.0
    %294 = vmatmul.mubr.f32.gmra.mxu0 %v216
    %v295 = vpop.f32.mrf.mxu0
    %v296 = vadd.f32 %v199, %v295
    %v297 = vpop.f32.mrf.mxu0
    %298 = vmatprep.mubr.f32.mxu0 0.0
    %299 = vmatmul.mubr.f32.gmra.mxu0 %v219
    %v300 = vpop.f32.mrf.mxu0
    %v301 = vadd.f32 %v204, %v300
    %v302 = vpop.f32.mrf.mxu0
    %303 = vmatprep.mubr.f32.mxu0 0.0
    %304 = vmatmul.mubr.f32.gmra.mxu0 %v222
    %v305 = vpop.f32.mrf.mxu0
    %v306 = vadd.f32 %v209, %v305
    %v307 = vpop.f32.mrf.mxu0
    %308 = vdwg.mxu0
    %v309 = vand.u32 2147483647, %v291
    %v310 = vand.u32 2147483647, %v296
    %v311 = vand.u32 2147483647, %v301
    %v312 = vand.u32 2147483647, %v306
    %v313 = vmul.f32 %v309, -2.0
    %v314 = vmul.f32 %v310, -2.0
    %v315 = vmul.f32 %v311, -2.0
    %v316 = vmul.f32 %v312, -2.0
    %v317 = vmul.f32 %v313, 1.442695
    %v318 = vpow.pop %v317
    %v319 = vmul.f32 %v314, 1.442695
    %v320 = vpow.pop %v319
    %v321 = vmul.f32 %v315, 1.442695
    %v322 = vpow.pop %v321
    %v323 = vmul.f32 %v316, 1.442695
    %v324 = vpow.pop %v323
    %v325 = vadd.f32 %v318, 1.0
    %v326 = vadd.f32 %v320, 1.0
    %v327 = vadd.f32 %v322, 1.0
    %v328 = vadd.f32 %v324, 1.0
    %v329 = vlog2.pop %v325
    %v330 = vmul.f32 %v329, 0.6931472
    %v331 = vlog2.pop %v326
    %v332 = vmul.f32 %v331, 0.6931472
    %v333 = vlog2.pop %v327
    %v334 = vmul.f32 %v333, 0.6931472
    %v335 = vlog2.pop %v328
    %v336 = vmul.f32 %v335, 0.6931472
    %v337 = vadd.f32 %v309, %v330
    %v338 = vadd.f32 %v310, %v332
    %v339 = vadd.f32 %v311, %v334
    %v340 = vadd.f32 %v312, %v336
    %v341 = vadd.f32 %v179, %v337
    %v342 = vadd.f32 %v180, %v338
    %v343 = vadd.f32 %v181, %v339
    %v344 = vadd.f32 %v182, %v340
    %s345 = scalar_lea.vmem %s3, 32
    %v346 = vld [vmem:[%s345] sm:$0xff]
    %v347 = vld [vmem:[%s345 + $0x8] sm:$0xff]
    %v348 = vld [vmem:[%s345 + $0x10] sm:$0xff]
    %v349 = vld [vmem:[%s345 + $0x18] sm:$0xff]
    %s350 = scalar_lea.vmem %s4, 32
    %v351 = vld [vmem:[%s350] sm:$0xff]
    %v352 = vld [vmem:[%s350 + $0x8] sm:$0xff]
    %v353 = vld [vmem:[%s350 + $0x10] sm:$0xff]
    %v354 = vld [vmem:[%s350 + $0x18] sm:$0xff]
    %356 = vset.pattern.permute.xlu0 0
    %357 = vperm.xlu0 %356, %v351
    %v358 = vpop.permute.xlu0 %357
    %361 = vset.pattern.permute.xlu0 0
    %362 = vperm.xlu0 %361, %v352
    %v363 = vpop.permute.xlu0 %362
    %366 = vset.pattern.permute.xlu0 0
    %367 = vperm.xlu0 %366, %v353
    %v368 = vpop.permute.xlu0 %367
    %371 = vset.pattern.permute.xlu0 0
    %372 = vperm.xlu0 %371, %v354
    %v373 = vpop.permute.xlu0 %372
    %v376 = vsel %vm211, %v346, 0
    %v379 = vsel %vm211, %v347, 0
    %v382 = vsel %vm211, %v348, 0
    %v385 = vsel %vm211, %v349, 0
    %387 = vmatprep.subr.mxu0 0.0
    %388 = vmatpush1.msra.mxu0 0.0
    %389 = vmatprep.subr.mxu0 0.0
    %390 = vmatpush1.msra.mxu0 0.0
    %391 = vmatprep.subr.mxu0 0.0
    %392 = vmatpush1.msra.mxu0 0.0
    %393 = vmatprep.subr.mxu0 0.0
    %394 = vmatpush1.msra.mxu0 0.0
    %395 = vmatprep.subr.mxu0 0.0
    %396 = vmatpush1.msra.mxu0 0.0
    %397 = vmatprep.subr.mxu0 0.0
    %398 = vmatpush1.msra.mxu0 0.0
    %399 = vmatprep.subr.mxu0 0.0
    %400 = vmatpush1.msra.mxu0 0.0
    %401 = vmatprep.subr.mxu0 0.0
    %402 = vmatpush1.msra.mxu0 0.0
    %403 = vmatprep.subr.mxu0 0.0
    %404 = vmatpush1.msra.mxu0 0.0
    %405 = vmatprep.subr.mxu0 0.0
    %406 = vmatpush1.msra.mxu0 0.0
    %407 = vmatprep.subr.mxu0 0.0
    %408 = vmatpush1.msra.mxu0 0.0
    %409 = vmatprep.subr.mxu0 0.0
    %410 = vmatpush1.msra.mxu0 0.0
    %411 = vmatprep.subr.mxu0 0.0
    %412 = vmatpush1.msra.mxu0 %v344
    %413 = vmatprep.subr.mxu0 0.0
    %414 = vmatpush1.msra.mxu0 %v343
    %415 = vmatprep.subr.mxu0 0.0
    %416 = vmatpush1.msra.mxu0 %v342
    %417 = vmatprep.subr.mxu0 0.0
    %418 = vmatpush1.msra.mxu0 %v341
    %419 = vmatprep.subr.mxu0 0.0
    %420 = vmatpush2.msra.mxu0 0.0
    %421 = vmatprep.subr.mxu0 0.0
    %422 = vmatpush2.msra.mxu0 0.0
    %423 = vmatprep.subr.mxu0 0.0
    %424 = vmatpush2.msra.mxu0 0.0
    %425 = vmatprep.subr.mxu0 0.0
    %426 = vmatpush2.msra.mxu0 0.0
    %427 = vmatprep.subr.mxu0 0.0
    %428 = vmatpush2.msra.mxu0 0.0
    %429 = vmatprep.subr.mxu0 0.0
    %430 = vmatpush2.msra.mxu0 0.0
    %431 = vmatprep.subr.mxu0 0.0
    %432 = vmatpush2.msra.mxu0 0.0
    %433 = vmatprep.subr.mxu0 0.0
    %434 = vmatpush2.msra.mxu0 0.0
    %435 = vmatprep.subr.mxu0 0.0
    %436 = vmatpush2.msra.mxu0 0.0
    %437 = vmatprep.subr.mxu0 0.0
    %438 = vmatpush2.msra.mxu0 0.0
    %439 = vmatprep.subr.mxu0 0.0
    %440 = vmatpush2.msra.mxu0 0.0
    %441 = vmatprep.subr.mxu0 0.0
    %442 = vmatpush2.msra.mxu0 0.0
    %443 = vmatprep.subr.mxu0 0.0
    %444 = vmatpush2.msra.mxu0 0.0
    %445 = vmatprep.subr.mxu0 0.0
    %446 = vmatpush2.msra.mxu0 0.0
    %447 = vmatprep.subr.mxu0 0.0
    %448 = vmatpush2.msra.mxu0 0.0
    %449 = vmatprep.subr.mxu0 0.0
    %450 = vmatpush2.msra.mxu0 0.0
    %451 = vmatprep.mubr.f32.mxu0 0.0
    %452 = vmatmul.mubr.f32.gmra.mxu0 %v376
    %v453 = vpop.f32.mrf.mxu0
    %v454 = vadd.f32 %v358, %v453
    %v455 = vpop.f32.mrf.mxu0
    %456 = vmatprep.mubr.f32.mxu0 0.0
    %457 = vmatmul.mubr.f32.gmra.mxu0 %v379
    %v458 = vpop.f32.mrf.mxu0
    %v459 = vadd.f32 %v363, %v458
    %v460 = vpop.f32.mrf.mxu0
    %461 = vmatprep.mubr.f32.mxu0 0.0
    %462 = vmatmul.mubr.f32.gmra.mxu0 %v382
    %v463 = vpop.f32.mrf.mxu0
    %v464 = vadd.f32 %v368, %v463
    %v465 = vpop.f32.mrf.mxu0
    %466 = vmatprep.mubr.f32.mxu0 0.0
    %467 = vmatmul.mubr.f32.gmra.mxu0 %v385
    %v468 = vpop.f32.mrf.mxu0
    %v469 = vadd.f32 %v373, %v468
    %v470 = vpop.f32.mrf.mxu0
    %471 = vdwg.mxu0
    %v472 = vand.u32 2147483647, %v454
    %v473 = vand.u32 2147483647, %v459
    %v474 = vand.u32 2147483647, %v464
    %v475 = vand.u32 2147483647, %v469
    %v476 = vmul.f32 %v472, -2.0
    %v477 = vmul.f32 %v473, -2.0
    %v478 = vmul.f32 %v474, -2.0
    %v479 = vmul.f32 %v475, -2.0
    %v480 = vmul.f32 %v476, 1.442695
    %v481 = vpow.pop %v480
    %v482 = vmul.f32 %v477, 1.442695
    %v483 = vpow.pop %v482
    %v484 = vmul.f32 %v478, 1.442695
    %v485 = vpow.pop %v484
    %v486 = vmul.f32 %v479, 1.442695
    %v487 = vpow.pop %v486
    %v488 = vadd.f32 %v481, 1.0
    %v489 = vadd.f32 %v483, 1.0
    %v490 = vadd.f32 %v485, 1.0
    %v491 = vadd.f32 %v487, 1.0
    %v492 = vlog2.pop %v488
    %v493 = vmul.f32 %v492, 0.6931472
    %v494 = vlog2.pop %v489
    %v495 = vmul.f32 %v494, 0.6931472
    %v496 = vlog2.pop %v490
    %v497 = vmul.f32 %v496, 0.6931472
    %v498 = vlog2.pop %v491
    %v499 = vmul.f32 %v498, 0.6931472
    %v500 = vadd.f32 %v472, %v493
    %v501 = vadd.f32 %v473, %v495
    %v502 = vadd.f32 %v474, %v497
    %v503 = vadd.f32 %v475, %v499
    %v504 = vadd.f32 %v341, %v500
    %v505 = vadd.f32 %v342, %v501
    %v506 = vadd.f32 %v343, %v502
    %v507 = vadd.f32 %v344, %v503
    %v508 = vld [vmem:[%s5] sm:$0x1]
    %v510 = vsel %vm211, %v508, 0
    %512 = vmatprep.subr.mxu0 0.0
    %513 = vmatpush1.msra.mxu0 0.0
    %514 = vmatprep.subr.mxu0 0.0
    %515 = vmatpush1.msra.mxu0 0.0
    %516 = vmatprep.subr.mxu0 0.0
    %517 = vmatpush1.msra.mxu0 0.0
    %518 = vmatprep.subr.mxu0 0.0
    %519 = vmatpush1.msra.mxu0 0.0
    %520 = vmatprep.subr.mxu0 0.0
    %521 = vmatpush1.msra.mxu0 0.0
    %522 = vmatprep.subr.mxu0 0.0
    %523 = vmatpush1.msra.mxu0 0.0
    %524 = vmatprep.subr.mxu0 0.0
    %525 = vmatpush1.msra.mxu0 0.0
    %526 = vmatprep.subr.mxu0 0.0
    %527 = vmatpush1.msra.mxu0 0.0
    %528 = vmatprep.subr.mxu0 0.0
    %529 = vmatpush1.msra.mxu0 0.0
    %530 = vmatprep.subr.mxu0 0.0
    %531 = vmatpush1.msra.mxu0 0.0
    %532 = vmatprep.subr.mxu0 0.0
    %533 = vmatpush1.msra.mxu0 0.0
    %534 = vmatprep.subr.mxu0 0.0
    %535 = vmatpush1.msra.mxu0 0.0
    %536 = vmatprep.subr.mxu0 0.0
    %537 = vmatpush1.msra.mxu0 %v507
    %538 = vmatprep.subr.mxu0 0.0
    %539 = vmatpush1.msra.mxu0 %v506
    %540 = vmatprep.subr.mxu0 0.0
    %541 = vmatpush1.msra.mxu0 %v505
    %542 = vmatprep.subr.mxu0 0.0
    %543 = vmatpush1.msra.mxu0 %v504
    %544 = vmatprep.subr.mxu0 0.0
    %545 = vmatpush2.msra.mxu0 0.0
    %546 = vmatprep.subr.mxu0 0.0
    %547 = vmatpush2.msra.mxu0 0.0
    %548 = vmatprep.subr.mxu0 0.0
    %549 = vmatpush2.msra.mxu0 0.0
    %550 = vmatprep.subr.mxu0 0.0
    %551 = vmatpush2.msra.mxu0 0.0
    %552 = vmatprep.subr.mxu0 0.0
    %553 = vmatpush2.msra.mxu0 0.0
    %554 = vmatprep.subr.mxu0 0.0
    %555 = vmatpush2.msra.mxu0 0.0
    %556 = vmatprep.subr.mxu0 0.0
    %557 = vmatpush2.msra.mxu0 0.0
    %558 = vmatprep.subr.mxu0 0.0
    %559 = vmatpush2.msra.mxu0 0.0
    %560 = vmatprep.subr.mxu0 0.0
    %561 = vmatpush2.msra.mxu0 0.0
    %562 = vmatprep.subr.mxu0 0.0
    %563 = vmatpush2.msra.mxu0 0.0
    %564 = vmatprep.subr.mxu0 0.0
    %565 = vmatpush2.msra.mxu0 0.0
    %566 = vmatprep.subr.mxu0 0.0
    %567 = vmatpush2.msra.mxu0 0.0
    %568 = vmatprep.subr.mxu0 0.0
    %569 = vmatpush2.msra.mxu0 0.0
    %570 = vmatprep.subr.mxu0 0.0
    %571 = vmatpush2.msra.mxu0 0.0
    %572 = vmatprep.subr.mxu0 0.0
    %573 = vmatpush2.msra.mxu0 0.0
    %574 = vmatprep.subr.mxu0 0.0
    %575 = vmatpush2.msra.mxu0 0.0
    %576 = vmatprep.mubr.f32.mxu0 0.0
    %577 = vmatmul.mubr.f32.gmra.mxu0 %v510
    %v578 = vpop.f32.mrf.mxu0
    %v579 = vadd.f32 0.0, %v578
    %v580 = vpop.f32.mrf.mxu0
    %581 = vdwg.mxu0
    %582 = vst [vmem:[#allocation2] sm:$0x1] %v579
    // Predicated region
    $region26: #{tpu_custom_call.1} parent=1 // pred_check
      _
    $region27: #{tpu_custom_call.1} parent=1 // pred_check_branch
      %584 = sbr.rel (0) target = $region29
    $region28: #{tpu_custom_call.1} parent=1 // pred_region
      %s586 = ssub.s32 16, 16
      %587 = vsyncadd [#allocation3], %s586
      %s589 = sshll.u32 [#allocation2], 4
      %s590 = int_to_ptr.vmem [resolvable:$true] %s589
      %592 = dma.vmem_to_hbm [thread:$0]  %s590, 16, %s6, [#allocation3]
    $region29: #{tpu_custom_call.1} parent=1 // pred_fallthru
      _
    // Predicated region
    $region30: #{tpu_custom_call.1} parent=1 // pred_check
      _
    $region31: #{tpu_custom_call.1} parent=1 // pred_check_branch
      %594 = sbr.rel (0) target = $region33
    $region32: #{tpu_custom_call.1} parent=1 // pred_region
      %595 = dma.done [#allocation3], 16
    $region33: #{tpu_custom_call.1} parent=1 // pred_fallthru
      _
    %596 = vsyncpa [#allocation3], 1

</llo_original>
